<compile_context>
chip_gen: v5e
topology: v5e:2x2
jax: 0.10.0
libtpu: 0.0.40
codegen_flags: <defaults>
</compile_context>

<pallas_src>
import jax
import jax.numpy as jnp
from jax.experimental import pallas as pl
from jax.experimental.pallas import tpu as pltpu


def _time_embed_kernel(x_ref, w1_ref, b1_ref, w2_ref, b2_ref, o_ref):
    # First linear: bf16 x bf16 -> f32 accumulate on the MXU.
    h = jnp.dot(x_ref[...], w1_ref[...], preferred_element_type=jnp.float32)
    h = h + b1_ref[...]                    # f32 bias add (VPU)
    h = h * jax.nn.sigmoid(h)              # SiLU in f32 (sigmoid -> EUP, mul -> VPU)
    h = h.astype(w2_ref.dtype)             # bf16 operand for the second matmul
    # Second linear: bf16 x bf16 -> f32 accumulate on the MXU.
    o = jnp.dot(h, w2_ref[...], preferred_element_type=jnp.float32)
    o = o + b2_ref[...]
    o_ref[...] = o.astype(o_ref.dtype)


def time_style_seperate_embed(time_emb, params, *, batch_tile=512):
    """JAX wrapper mirroring TimeStyleSeperateEmbed.forward.

    time_emb: [B, Cin] or None. Returns [B, Cout] (or None, matching the module).
    """
    if time_emb is None:
        return None

    w1, b1, w2, b2 = params["w1"], params["b1"], params["w2"], params["b2"]
    B, Cin = time_emb.shape
    Cout = w1.shape[1]
    out_dtype = time_emb.dtype
    out_shape = jax.ShapeDtypeStruct((B, Cout), out_dtype)

    # bf16 MXU operands; biases stay f32 (accumulation / SiLU are f32 in-kernel).
    x_bf16 = time_emb.astype(jnp.bfloat16)
    w1_bf16 = w1.astype(jnp.bfloat16)
    w2_bf16 = w2.astype(jnp.bfloat16)

    # TODO(synk): if Cout is configurable in the real model, pad it to 128 so the
    # output store is lane-dense (unmasked vst) instead of masked partial stores.

    # Pick a batch tile only if B is large enough to benefit from streaming.
    tile_b = None
    for cand in (batch_tile, 256, 128):
        if B >= 2 * cand and B % cand == 0:
            tile_b = cand
            break

    if tile_b is None:
        # Gridless path: single invocation, everything resident in VMEM.
        # No pipeline scaffold / double-buffering for a 1-point grid.
        vmem = pl.BlockSpec(memory_space=pltpu.MemorySpace.VMEM)
        return pl.pallas_call(
            _time_embed_kernel,
            out_shape=out_shape,
            in_specs=[vmem, vmem, vmem, vmem, vmem],
            out_specs=vmem,
        )(x_bf16, w1_bf16, b1, w2_bf16, b2)

    # Batch-tiled path: weights/biases pinned in VMEM (constant index maps),
    # only x/out tiles stream. Batch axis is "parallel" (megacore on v7x).
    grid = (B // tile_b,)
    return pl.pallas_call(
        _time_embed_kernel,
        out_shape=out_shape,
        grid_spec=pltpu.PrefetchScalarGridSpec(
            num_scalar_prefetch=0,
            grid=grid,
            in_specs=[
                pl.BlockSpec((tile_b, Cin), lambda i: (i, 0)),
                pl.BlockSpec((Cin, Cout), lambda i: (0, 0)),
                pl.BlockSpec((1, Cout), lambda i: (0, 0)),
                pl.BlockSpec((Cout, Cout), lambda i: (0, 0)),
                pl.BlockSpec((1, Cout), lambda i: (0, 0)),
            ],
            out_specs=pl.BlockSpec((tile_b, Cout), lambda i: (i, 0)),
        ),
        compiler_params=pltpu.CompilerParams(
            dimension_semantics=("parallel",)
        ),
    )(x_bf16, w1_bf16, b1, w2_bf16, b2)


def init_params(key, time_channels, time_out_channels, dtype=jnp.float32):
    """Deterministic synthetic init (shapes match nn.Linear weights, transposed)."""
    k1, k2, k3, k4 = jax.random.split(key, 4)
    s1 = 1.0 / jnp.sqrt(jnp.asarray(time_channels, dtype))
    s2 = 1.0 / jnp.sqrt(jnp.asarray(time_out_channels, dtype))
    return {
        "w1": jax.random.normal(k1, (time_channels, time_out_channels), dtype) * s1,
        "b1": jax.random.normal(k2, (1, time_out_channels), dtype) * s1,
        "w2": jax.random.normal(k3, (time_out_channels, time_out_channels), dtype) * s2,
        "b2": jax.random.normal(k4, (1, time_out_channels), dtype) * s2,
    }


def _reference_f32(time_emb, params):
    """Pure-JAX f32 reference (module semantics)."""
    h = time_emb @ params["w1"] + params["b1"]
    h = h * jax.nn.sigmoid(h)
    return h @ params["w2"] + params["b2"]


def _reference_bf16(time_emb, params):
    """Pure-JAX reference that mirrors the kernel's bf16-operand / f32-accum math."""
    x = time_emb.astype(jnp.bfloat16)
    w1 = params["w1"].astype(jnp.bfloat16)
    w2 = params["w2"].astype(jnp.bfloat16)
    h = jnp.dot(x, w1, preferred_element_type=jnp.float32) + params["b1"]
    h = h * jax.nn.sigmoid(h)
    o = jnp.dot(h.astype(jnp.bfloat16), w2, preferred_element_type=jnp.float32)
    return (o + params["b2"]).astype(time_emb.dtype)


if __name__ == "__main__":
    key = jax.random.PRNGKey(0)
    k_x, k_p, k_x2 = jax.random.split(key, 3)

    batch = 8
    time_channels = 32
    time_out_channels = 64

    params = init_params(k_p, time_channels, time_out_channels)

    # --- small batch: gridless path ---
    time_emb = jax.random.normal(k_x, (batch, time_channels), jnp.float32)
    out = jax.block_until_ready(time_style_seperate_embed(time_emb, params))
    assert out.shape == (batch, time_out_channels)
    ref_bf16 = _reference_bf16(time_emb, params)
    ref_f32 = _reference_f32(time_emb, params)
    assert jnp.allclose(out, ref_bf16, atol=2e-3, rtol=2e-3), "mismatch vs bf16 reference"
    assert jnp.allclose(out, ref_f32, atol=5e-2, rtol=5e-2), "mismatch vs f32 reference"

    # --- large batch: batch-tiled path (weights pinned, 'parallel' batch axis) ---
    big_batch = 1024
    time_emb_big = jax.random.normal(k_x2, (big_batch, time_channels), jnp.float32)
    out_big = jax.block_until_ready(time_style_seperate_embed(time_emb_big, params))
    assert out_big.shape == (big_batch, time_out_channels)
    ref_big = _reference_bf16(time_emb_big, params)
    assert jnp.allclose(out_big, ref_big, atol=2e-3, rtol=2e-3), "mismatch (tiled path)"

    # time_emb=None path returns None, matching the PyTorch module.
    assert time_style_seperate_embed(None, params) is None

    print("KERNEL_OK")
</pallas_src>

<mosaic_0001>
module attributes {stable_mosaic.version = 11 : i64} {
  func.func @_time_embed_kernel(%arg0: memref<8x32xbf16, #tpu.memory_space<vmem>>, %arg1: memref<32x64xbf16, #tpu.memory_space<vmem>>, %arg2: memref<1x64xf32, #tpu.memory_space<vmem>>, %arg3: memref<64x64xbf16, #tpu.memory_space<vmem>>, %arg4: memref<1x64xf32, #tpu.memory_space<vmem>>, %arg5: memref<8x64xf32, #tpu.memory_space<vmem>>) attributes {dimension_semantics = [], scalar_prefetch = 0 : i64, scratch_operands = 0 : i64, tpu.core_type = #tpu.core_type<tc>} {
    %c0 = arith.constant 0 : index
    %c0_0 = arith.constant 0 : index
    %0 = vector.load %arg0[%c0, %c0_0] : memref<8x32xbf16, #tpu.memory_space<vmem>>, vector<8x32xbf16>
    %c0_1 = arith.constant 0 : index
    %c0_2 = arith.constant 0 : index
    %1 = vector.load %arg1[%c0_1, %c0_2] : memref<32x64xbf16, #tpu.memory_space<vmem>>, vector<32x64xbf16>
    %cst = arith.constant dense<0.000000e+00> : vector<8x64xf32>
    %2 = tpu.matmul %0, %1, %cst {dimension_numbers = #tpu.dot_dimension_numbers<[1], [0], [0], [1], [0, 0, 1, 1], [], []>} : vector<8x32xbf16>, vector<32x64xbf16>, vector<8x64xf32> -> vector<8x64xf32>
    %c0_3 = arith.constant 0 : index
    %c0_4 = arith.constant 0 : index
    %3 = vector.load %arg2[%c0_3, %c0_4] : memref<1x64xf32, #tpu.memory_space<vmem>>, vector<1x64xf32>
    %4 = vector.broadcast %3 : vector<1x64xf32> to vector<8x64xf32>
    %5 = arith.addf %2, %4 : vector<8x64xf32>
    %6 = arith.negf %5 : vector<8x64xf32>
    %7 = math.exp %6 : vector<8x64xf32>
    %cst_5 = arith.constant 1.000000e+00 : f32
    %8 = vector.broadcast %cst_5 : f32 to vector<8x64xf32>
    %9 = arith.addf %8, %7 : vector<8x64xf32>
    %10 = arith.divf %8, %9 : vector<8x64xf32>
    %11 = arith.mulf %5, %10 : vector<8x64xf32>
    %12 = arith.truncf %11 : vector<8x64xf32> to vector<8x64xbf16>
    %c0_6 = arith.constant 0 : index
    %c0_7 = arith.constant 0 : index
    %13 = vector.load %arg3[%c0_6, %c0_7] : memref<64x64xbf16, #tpu.memory_space<vmem>>, vector<64x64xbf16>
    %cst_8 = arith.constant dense<0.000000e+00> : vector<8x64xf32>
    %14 = tpu.matmul %12, %13, %cst_8 {dimension_numbers = #tpu.dot_dimension_numbers<[1], [0], [0], [1], [0, 0, 1, 1], [], []>} : vector<8x64xbf16>, vector<64x64xbf16>, vector<8x64xf32> -> vector<8x64xf32>
    %c0_9 = arith.constant 0 : index
    %c0_10 = arith.constant 0 : index
    %15 = vector.load %arg4[%c0_9, %c0_10] : memref<1x64xf32, #tpu.memory_space<vmem>>, vector<1x64xf32>
    %16 = vector.broadcast %15 : vector<1x64xf32> to vector<8x64xf32>
    %17 = arith.addf %14, %16 : vector<8x64xf32>
    %c0_11 = arith.constant 0 : index
    %c0_12 = arith.constant 0 : index
    %18 = vector.load %arg5[%c0_11, %c0_12] : memref<8x64xf32, #tpu.memory_space<vmem>>, vector<8x64xf32>
    tpu.vector_store %arg5[%c0_11, %c0_12], %17 {strides = array<i32>} : memref<8x64xf32, #tpu.memory_space<vmem>>, vector<8x64xf32>,
    return
  }
}

</mosaic_0001>

<llo_original>
// kernel: tpu_custom_call.1
$region0: #{tpu_custom_call.1}
  #allocation0 [shape = 'u32[]', space=smem, size = 0x4, offset = 0x4, fixed_abs, tag = 'smem constant byte address 0x4 - core index']
  #allocation1 [shape = 'u32[72,128]{1,0:T(1,128)}', space=vmem, size = 0x9000, scoped, tag = 'internal scratch']
  %s0 = inlined_call_operand.hbm [shape: bf16[8,32], index: 0, kind: input, shape index: {}]
  %s1 = inlined_call_operand.hbm [shape: bf16[32,64], index: 1, kind: input, shape index: {}]
  %s2 = inlined_call_operand.vmem [shape: f32[1,64], index: 2, kind: input, shape index: {}]
  %s3 = inlined_call_operand.hbm [shape: bf16[64,64], index: 3, kind: input, shape index: {}]
  %s4 = inlined_call_operand.vmem [shape: f32[1,64], index: 4, kind: input, shape index: {}]
  %s5 = inlined_call_operand.hbm [shape: f32[8,64], index: 5, kind: output, shape index: {}]
  %s6 = sld [smem:[#allocation0]]
  $region42: #{tpu_custom_call.1} parent=0
    _
  %s8 = ssub.s32 1, %s6
  %s9 = scalar_select 0, %s8, %s6
  $region1: #{tpu_custom_call.1} parent=0
    #allocation2 [shape = 'u8[2048]{0}', space=vmem, size = 0x800, scoped, tag = 'input window, operand 0, single buffered']
    #allocation3 [shape = 's32[1]{0}', space=sflag, size = 0x4, scoped, tag = 'scoped memory for tpu_custom_call.1']
    #allocation4 [shape = 's32[1]{0}', space=sflag, size = 0x4, scoped, tag = 'scoped memory for tpu_custom_call.1']
    #allocation5 [shape = 'u8[8192]{0}', space=vmem, size = 0x2000, scoped, tag = 'input window, operand 1, single buffered']
    #allocation6 [shape = 's32[1]{0}', space=sflag, size = 0x4, scoped, tag = 'scoped memory for tpu_custom_call.1']
    #allocation7 [shape = 'u8[16384]{0}', space=vmem, size = 0x4000, scoped, tag = 'input window, operand 3, single buffered']
    #allocation8 [shape = 'u8[4096]{0}', space=vmem, size = 0x1000, scoped, tag = 'output window, operand 0, single buffered']
    %10 = vsyncpa [#allocation3], 0
    %11 = vsyncpa [#allocation6], 0
    %12 = vsyncpa [#allocation4], 0
    // Predicated region
    $region2: #{tpu_custom_call.1} parent=1 // pred_check
      _
    $region3: #{tpu_custom_call.1} parent=1 // pred_check_branch
      %14 = sbr.rel (0) target = $region5
    $region4: #{tpu_custom_call.1} parent=1 // pred_region
      %16 = vsyncadd [#allocation3], 0
      %s18 = sshll.u32 %s0, 4
      %s19 = int_to_ptr.hbm [resolvable:$true] %s18
      %s20 = sshll.u32 [#allocation2], 4
      %s21 = int_to_ptr.vmem [resolvable:$true] %s20
      %23 = dma.hbm_to_vmem [thread:$0]  %s19, 64, %s21, [#allocation3]
    $region5: #{tpu_custom_call.1} parent=1 // pred_fallthru
      _
    // Predicated region
    $region6: #{tpu_custom_call.1} parent=1 // pred_check
      _
    $region7: #{tpu_custom_call.1} parent=1 // pred_check_branch
      %25 = sbr.rel (0) target = $region9
    $region8: #{tpu_custom_call.1} parent=1 // pred_region
      %27 = vsyncadd [#allocation6], 0
      %s28 = sshll.u32 %s1, 4
      %s29 = int_to_ptr.hbm [resolvable:$true] %s28
      %s30 = sshll.u32 [#allocation5], 4
      %s31 = int_to_ptr.vmem [resolvable:$true] %s30
      %36 = dma.hbm_to_vmem [thread:$0]  %s29, 256, %s31, [#allocation6], 64, 64, 4
    $region9: #{tpu_custom_call.1} parent=1 // pred_fallthru
      _
    // Predicated region
    $region10: #{tpu_custom_call.1} parent=1 // pred_check
      _
    $region11: #{tpu_custom_call.1} parent=1 // pred_check_branch
      %38 = sbr.rel (0) target = $region13
    $region12: #{tpu_custom_call.1} parent=1 // pred_region
      _
    $region13: #{tpu_custom_call.1} parent=1 // pred_fallthru
      _
    // Predicated region
    $region14: #{tpu_custom_call.1} parent=1 // pred_check
      _
    $region15: #{tpu_custom_call.1} parent=1 // pred_check_branch
      %40 = sbr.rel (0) target = $region17
    $region16: #{tpu_custom_call.1} parent=1 // pred_region
      %42 = vsyncadd [#allocation6], 0
      %s43 = sshll.u32 %s3, 4
      %s44 = int_to_ptr.hbm [resolvable:$true] %s43
      %s45 = sshll.u32 [#allocation7], 4
      %s46 = int_to_ptr.vmem [resolvable:$true] %s45
      %51 = dma.hbm_to_vmem [thread:$0]  %s44, 512, %s46, [#allocation6], 64, 64, 4
    $region17: #{tpu_custom_call.1} parent=1 // pred_fallthru
      _
    // Predicated region
    $region18: #{tpu_custom_call.1} parent=1 // pred_check
      _
    $region19: #{tpu_custom_call.1} parent=1 // pred_check_branch
      %53 = sbr.rel (0) target = $region21
    $region20: #{tpu_custom_call.1} parent=1 // pred_region
      _
    $region21: #{tpu_custom_call.1} parent=1 // pred_fallthru
      _
    // Predicated region
    $region22: #{tpu_custom_call.1} parent=1 // pred_check
      _
    $region23: #{tpu_custom_call.1} parent=1 // pred_check_branch
      %55 = sbr.rel (0) target = $region25
    $region24: #{tpu_custom_call.1} parent=1 // pred_region
      %57 = dma.done [#allocation3], 64
    $region25: #{tpu_custom_call.1} parent=1 // pred_fallthru
      _
    // Predicated region
    $region26: #{tpu_custom_call.1} parent=1 // pred_check
      _
    $region27: #{tpu_custom_call.1} parent=1 // pred_check_branch
      %59 = sbr.rel (0) target = $region29
    $region28: #{tpu_custom_call.1} parent=1 // pred_region
      %61 = dma.done [#allocation6], 256
    $region29: #{tpu_custom_call.1} parent=1 // pred_fallthru
      _
    // Predicated region
    $region30: #{tpu_custom_call.1} parent=1 // pred_check
      _
    $region31: #{tpu_custom_call.1} parent=1 // pred_check_branch
      %63 = sbr.rel (0) target = $region33
    $region32: #{tpu_custom_call.1} parent=1 // pred_region
      %65 = dma.done [#allocation6], 512
    $region33: #{tpu_custom_call.1} parent=1 // pred_fallthru
      _
    %v67 = vld [vmem:[#allocation2] sm:$0xf]
    %v68 = vld [vmem:[#allocation5] sm:$0xf]
    %v69 = vld [vmem:[#allocation5 + $0x4] sm:$0xf]
    %v70 = vld [vmem:[#allocation5 + $0x8] sm:$0xf]
    %v71 = vld [vmem:[#allocation5 + $0xc] sm:$0xf]
    %v72 = vld [vmem:[%s2] sm:$0x1]
    %v74 = vperm.slane %v72, 0
    %v80 = vunpack.c.l.b16 %v68
    %v81 = vunpack.c.l.b16 %v69
    %v82 = vunpack.c.l.b16 %v70
    %v83 = vunpack.c.l.b16 %v71
    %v84 = vpack.c.b16 %v81, %v80
    %v85 = vpack.c.b16 %v83, %v82
    %vm88 = vcmask 261120
    %v90 = vsel %vm88, %v67, 0
    %92 = vmatpush.bf16.msra.mxu0 0
    %93 = vmatpush.bf16.msra.mxu0 0
    %94 = vmatpush.bf16.msra.mxu0 0
    %95 = vmatpush.bf16.msra.mxu0 0
    %96 = vmatpush.bf16.msra.mxu0 0
    %97 = vmatpush.bf16.msra.mxu0 0
    %98 = vmatpush.bf16.msra.mxu0 %v85
    %99 = vmatpush.bf16.msra.mxu0 %v84
    %100 = vmatmul.bf16.gmra.mxu0 %v90
    %v101 = vpop.f32.mrf.mxu0
    %v102 = vadd.f32 %v74, %v101
    %v103 = vpop.f32.mrf.mxu0
    %104 = vdwg.mxu0
    %v105 = vxor.u32 %v102, 2147483648
    %v106 = vmul.f32 %v105, 1.442695
    %v107 = vpow.pop %v106
    %v108 = vadd.f32 %v107, 1.0
    %v109 = vrcp.pop %v108
    %v110 = vmul.f32 %v108, %v109
    %v111 = vsub.f32 1.0, %v110
    %v112 = vmul.f32 %v109, %v111
    %v113 = vadd.f32 %v109, %v112
    %vm114 = vweird.f32 %v108
    %vm115 = vweird.f32 %v109
    %vm116 = vmor %vm114, %vm115
    %v117 = vsel %vm116, %v109, %v113
    %v118 = vand.u32 2147483647, %v108
    %vm119 = vcmp.eq.f32.partialorder %v118, 8.507059e+37
    %v120 = vand.u32 %v108, 2147483648
    %v121 = vor.u32 1.1754944e-38, %v120
    %v122 = vsel %vm119, %v121, %v117
    %v123 = vmul.f32 1.0, %v122
    %v124 = vmul.f32 %v102, %v123
    %v125 = vpack.c.bf16 %v124, %v124
    %v126 = vld [vmem:[#allocation7] sm:$0xf]
    %v127 = vld [vmem:[#allocation7 + $0x4] sm:$0xf]
    %v128 = vld [vmem:[#allocation7 + $0x8] sm:$0xf]
    %v129 = vld [vmem:[#allocation7 + $0xc] sm:$0xf]
    %v130 = vld [vmem:[#allocation7 + $0x10] sm:$0xf]
    %v131 = vld [vmem:[#allocation7 + $0x14] sm:$0xf]
    %v132 = vld [vmem:[#allocation7 + $0x18] sm:$0xf]
    %v133 = vld [vmem:[#allocation7 + $0x1c] sm:$0xf]
    %v134 = vld [vmem:[%s4] sm:$0x1]
    %v136 = vperm.slane %v134, 0
    %v146 = vunpack.c.l.b16 %v126
    %v147 = vunpack.c.l.b16 %v127
    %v148 = vunpack.c.l.b16 %v128
    %v149 = vunpack.c.l.b16 %v129
    %v150 = vunpack.c.l.b16 %v130
    %v151 = vunpack.c.l.b16 %v131
    %v152 = vunpack.c.l.b16 %v132
    %v153 = vunpack.c.l.b16 %v133
    %v154 = vpack.c.b16 %v147, %v146
    %v155 = vpack.c.b16 %v149, %v148
    %v156 = vpack.c.b16 %v151, %v150
    %v157 = vpack.c.b16 %v153, %v152
    %vm162 = vcmask 523264
    %v164 = vsel %vm162, %v125, 0
    %166 = vmatpush.bf16.msra.mxu0 0
    %167 = vmatpush.bf16.msra.mxu0 0
    %168 = vmatpush.bf16.msra.mxu0 0
    %169 = vmatpush.bf16.msra.mxu0 0
    %170 = vmatpush.bf16.msra.mxu0 %v157
    %171 = vmatpush.bf16.msra.mxu0 %v156
    %172 = vmatpush.bf16.msra.mxu0 %v155
    %173 = vmatpush.bf16.msra.mxu0 %v154
    %174 = vmatmul.bf16.gmra.mxu0 %v164
    %v175 = vpop.f32.mrf.mxu0
    %v176 = vadd.f32 %v136, %v175
    %v177 = vpop.f32.mrf.mxu0
    %178 = vdwg.mxu0
    %179 = vst.msk [vmem:[#allocation8] sm:$0xff] %vm162, %v176
    // Predicated region
    $region34: #{tpu_custom_call.1} parent=1 // pred_check
      _
    $region35: #{tpu_custom_call.1} parent=1 // pred_check_branch
      %181 = sbr.rel (0) target = $region37
    $region36: #{tpu_custom_call.1} parent=1 // pred_region
      %183 = vsyncadd [#allocation4], 0
      %s185 = sshll.u32 [#allocation8], 4
      %s186 = int_to_ptr.vmem [resolvable:$true] %s185
      %s187 = sshll.u32 %s5, 4
      %s188 = int_to_ptr.hbm [resolvable:$true] %s187
      %190 = dma.vmem_to_hbm [thread:$0]  %s186, 128, %s188, [#allocation4]
    $region37: #{tpu_custom_call.1} parent=1 // pred_fallthru
      _
    // Predicated region
    $region38: #{tpu_custom_call.1} parent=1 // pred_check
      _
    $region39: #{tpu_custom_call.1} parent=1 // pred_check_branch
      %192 = sbr.rel (0) target = $region41
    $region40: #{tpu_custom_call.1} parent=1 // pred_region
      %194 = dma.done [#allocation4], 128
    $region41: #{tpu_custom_call.1} parent=1 // pred_fallthru
      _
    %195 = vsyncpa [#allocation3], 1
    %196 = vsyncpa [#allocation6], 1
    %197 = vsyncpa [#allocation4], 1

</llo_original>
